<compile_context>
chip_gen: v6e
topology: v6e:2x2x1
jax: 0.10.0
libtpu: 0.0.40
codegen_flags: <defaults>
</compile_context>

<pallas_src>
import functools

import jax
import jax.numpy as jnp
from jax.experimental import pallas as pl
from jax.experimental.pallas import tpu as pltpu


def round_up(x, m):
    return (x + m - 1) // m * m


# ----------------------------------------------------------------------------
# Kernel 1: global average pool over spatial dims, NCHW native layout.
# ----------------------------------------------------------------------------
def _gap_kernel(x_ref, o_ref, acc_ref, *, inv_hw):
    j = pl.program_id(1)

    @pl.when(j == 0)
    def _():
        acc_ref[...] = jnp.zeros_like(acc_ref)

    # Row-sum of this (tm, thw) chunk (cross-lane reduce on the XLU; the
    # kernel is HBM-bound so this hides under the input DMA).
    acc_ref[...] += jnp.sum(x_ref[...], axis=-1, keepdims=True)

    @pl.when(j == pl.num_programs(1) - 1)
    def _():
        o_ref[...] = acc_ref[...] * inv_hw


def global_avg_pool_nchw(x_nchw):
    """x: (B, C, H, W) f32 -> (B, C) spatial mean. Reads x exactly once."""
    B, C, H, W = x_nchw.shape
    HW = H * W
    M = B * C
    xr = x_nchw.reshape(M, HW).astype(jnp.float32)

    tm = min(512, round_up(M, 8))
    thw = min(1024, round_up(HW, 128))
    Mp = round_up(M, tm)
    HWp = round_up(HW, thw)
    xp = jnp.pad(xr, ((0, Mp - M), (0, HWp - HW)))  # zero-pad: sums unchanged

    out = pl.pallas_call(
        functools.partial(_gap_kernel, inv_hw=1.0 / float(HW)),
        out_shape=jax.ShapeDtypeStruct((Mp, 1), jnp.float32),
        grid_spec=pltpu.PrefetchScalarGridSpec(
            num_scalar_prefetch=0,
            grid=(Mp // tm, HWp // thw),
            in_specs=[pl.BlockSpec((tm, thw), lambda i, j: (i, j))],
            out_specs=pl.BlockSpec((tm, 1), lambda i, j: (i, 0)),
            scratch_shapes=[pltpu.VMEM((tm, 1), jnp.float32)]),
        compiler_params=pltpu.CompilerParams(
            dimension_semantics=("parallel", "arbitrary"),
            vmem_limit_bytes=32 * 1024 * 1024),
    )(xp)
    return out[:M, 0].reshape(B, C)


# ----------------------------------------------------------------------------
# Kernel 2: fused MLP  (lin1 + bias + ReLU + lin2 + bias + sigmoid(2x)).
# ----------------------------------------------------------------------------
def _ca_mlp_kernel(g_ref, w1_ref, b1_ref, w2_ref, b2_ref, o_ref):
    # bf16 MXU operands, f32 accumulation.
    g = g_ref[...].astype(jnp.bfloat16)
    h = jnp.dot(g, w1_ref[...], preferred_element_type=jnp.float32)
    h = jnp.maximum(h + b1_ref[...], 0.0)
    y = jnp.dot(h.astype(jnp.bfloat16), w2_ref[...],
                preferred_element_type=jnp.float32)
    y = y + b2_ref[...]
    # avg branch == max branch (both AdaptiveAvgPool2d in the reference)
    #   => sigmoid(avg_out + max_out) == sigmoid(2 * y)
    o_ref[...] = 1.0 / (1.0 + jnp.exp(-2.0 * y))


def channel_attention_mlp(g, prep):
    """g: (B, C) pooled features -> (B, C) attention weights."""
    B, C = g.shape
    Cp = prep["w2t"].shape[1]
    MIDp = prep["w1t"].shape[1]
    Bp = round_up(B, 8)
    gp = jnp.pad(g.astype(jnp.float32), ((0, Bp - B), (0, Cp - C)))

    out = pl.pallas_call(
        _ca_mlp_kernel,
        out_shape=jax.ShapeDtypeStruct((Bp, Cp), jnp.float32),
        grid=(1,),
        in_specs=[pl.BlockSpec((Bp, Cp), lambda i: (0, 0)),
                  pl.BlockSpec((Cp, MIDp), lambda i: (0, 0)),
                  pl.BlockSpec((1, MIDp), lambda i: (0, 0)),
                  pl.BlockSpec((MIDp, Cp), lambda i: (0, 0)),
                  pl.BlockSpec((1, Cp), lambda i: (0, 0))],
        out_specs=pl.BlockSpec((Bp, Cp), lambda i: (0, 0)),
        compiler_params=pltpu.CompilerParams(
            dimension_semantics=("arbitrary",),
            vmem_limit_bytes=32 * 1024 * 1024),
    )(gp, prep["w1t"], prep["b1"], prep["w2t"], prep["b2"])
    return out[:B, :C]


# ----------------------------------------------------------------------------
# Parameter prep: transpose / pad / cast the Linear weights ONCE.
# ----------------------------------------------------------------------------
def prepare_params(params, C):
    """params: {'lin1': {'w': (mid,C), 'b': (mid,)}, 'lin2': {'w': (C,mid), 'b': (C,)}}"""
    mid = params["lin1"]["w"].shape[0]
    Cp = round_up(C, 128)
    MIDp = round_up(mid, 128)
    w1t = jnp.pad(params["lin1"]["w"].T.astype(jnp.float32),
                  ((0, Cp - C), (0, MIDp - mid))).astype(jnp.bfloat16)
    b1 = jnp.pad(params["lin1"]["b"].astype(jnp.float32)[None, :],
                 ((0, 0), (0, MIDp - mid)))
    w2t = jnp.pad(params["lin2"]["w"].T.astype(jnp.float32),
                  ((0, MIDp - mid), (0, Cp - C))).astype(jnp.bfloat16)
    b2 = jnp.pad(params["lin2"]["b"].astype(jnp.float32)[None, :],
                 ((0, 0), (0, Cp - C)))
    return {"w1t": w1t, "b1": b1, "w2t": w2t, "b2": b2}


# ----------------------------------------------------------------------------
# Full ChannelAttention forward (NCHW in -> (B, C, 1, 1) out).
# ----------------------------------------------------------------------------
def channel_attention_forward(prep, x_nchw):
    B, C, H, W = x_nchw.shape
    g = global_avg_pool_nchw(x_nchw)         # (B, C)   -- kernel 1
    att = channel_attention_mlp(g, prep)     # (B, C)   -- kernel 2 (fused MLP)
    return att.reshape(B, C, 1, 1)


# ----------------------------------------------------------------------------
# main
# ----------------------------------------------------------------------------
if __name__ == "__main__":
    key = jax.random.PRNGKey(0)
    kx, k1, k2, k3, k4 = jax.random.split(key, 5)

    B, C, H, W = 2, 128, 16, 16
    reduction = 16
    mid = C // reduction

    x = jax.random.normal(kx, (B, C, H, W), dtype=jnp.float32)
    params = {
        "lin1": {"w": 0.05 * jax.random.normal(k1, (mid, C), jnp.float32),
                 "b": 0.05 * jax.random.normal(k2, (mid,), jnp.float32)},
        "lin2": {"w": 0.05 * jax.random.normal(k3, (C, mid), jnp.float32),
                 "b": 0.05 * jax.random.normal(k4, (C,), jnp.float32)},
    }
    prep = prepare_params(params, C)

    fwd = jax.jit(channel_attention_forward)
    out = jax.block_until_ready(fwd(prep, x))

    # Pure-JAX reference (f32) of the same eval-mode semantics.
    g_ref = jnp.mean(x, axis=(2, 3))
    h_ref = jnp.maximum(g_ref @ params["lin1"]["w"].T + params["lin1"]["b"], 0.0)
    y_ref = h_ref @ params["lin2"]["w"].T + params["lin2"]["b"]
    ref = jax.nn.sigmoid(2.0 * y_ref).reshape(B, C, 1, 1)

    assert out.shape == (B, C, 1, 1), out.shape
    assert bool(jnp.all(jnp.isfinite(out)))
    assert float(jnp.max(jnp.abs(out - ref))) < 1e-2, "mismatch vs reference"
    print("KERNEL_OK")
</pallas_src>

<mosaic_0001>
module attributes {stable_mosaic.version = 11 : i64} {
  func.func @_gap_kernel(%arg0: i32, %arg1: i32, %arg2: memref<256x256xf32, #tpu.memory_space<vmem>>, %arg3: memref<256x1xf32, #tpu.memory_space<vmem>>, %arg4: memref<256x1xf32, #tpu.memory_space<vmem>>) attributes {dimension_semantics = [#tpu.dimension_semantics<parallel>, #tpu.dimension_semantics<arbitrary>], iteration_bounds = array<i64: 1, 1>, scalar_prefetch = 0 : i64, scratch_operands = 1 : i64, tpu.core_type = #tpu.core_type<tc>, window_params = [{transform_indices = @transform_0, window_bounds = array<i64: 256, 256>}, {transform_indices = @transform_1, window_bounds = array<i64: 256, 1>}]} {
    %c0_i32 = arith.constant 0 : i32
    %0 = arith.cmpi eq, %arg1, %c0_i32 : i32
    %1 = arith.extui %0 : i1 to i32
    %c0_i32_0 = arith.constant 0 : i32
    %2 = arith.cmpi ne, %1, %c0_i32_0 : i32
    scf.if %2 {
      %cst_8 = arith.constant 0.000000e+00 : f32
      %12 = vector.broadcast %cst_8 : f32 to vector<256x1xf32>
      %c0_9 = arith.constant 0 : index
      %c0_10 = arith.constant 0 : index
      %13 = vector.load %arg4[%c0_9, %c0_10] : memref<256x1xf32, #tpu.memory_space<vmem>>, vector<256x1xf32>
      tpu.vector_store %arg4[%c0_9, %c0_10], %12 {strides = array<i32>} : memref<256x1xf32, #tpu.memory_space<vmem>>, vector<256x1xf32>,
    } else {
    }
    %c0 = arith.constant 0 : index
    %c0_1 = arith.constant 0 : index
    %3 = vector.load %arg4[%c0, %c0_1] : memref<256x1xf32, #tpu.memory_space<vmem>>, vector<256x1xf32>
    %c0_2 = arith.constant 0 : index
    %c0_3 = arith.constant 0 : index
    %4 = vector.load %arg2[%c0_2, %c0_3] : memref<256x256xf32, #tpu.memory_space<vmem>>, vector<256x256xf32>
    %cst = arith.constant dense<0.000000e+00> : vector<256xf32>
    %5 = vector.multi_reduction <add>, %4, %cst [1] : vector<256x256xf32> to vector<256xf32>
    %6 = vector.shape_cast %5 : vector<256xf32> to vector<256x1xf32>
    %7 = arith.addf %3, %6 : vector<256x1xf32>
    %c0_4 = arith.constant 0 : index
    %c0_5 = arith.constant 0 : index
    %8 = vector.load %arg4[%c0_4, %c0_5] : memref<256x1xf32, #tpu.memory_space<vmem>>, vector<256x1xf32>
    tpu.vector_store %arg4[%c0_4, %c0_5], %7 {strides = array<i32>} : memref<256x1xf32, #tpu.memory_space<vmem>>, vector<256x1xf32>,
    %c0_i32_6 = arith.constant 0 : i32
    %9 = arith.cmpi eq, %arg1, %c0_i32_6 : i32
    %10 = arith.extui %9 : i1 to i32
    %c0_i32_7 = arith.constant 0 : i32
    %11 = arith.cmpi ne, %10, %c0_i32_7 : i32
    scf.if %11 {
      %c0_8 = arith.constant 0 : index
      %c0_9 = arith.constant 0 : index
      %12 = vector.load %arg4[%c0_8, %c0_9] : memref<256x1xf32, #tpu.memory_space<vmem>>, vector<256x1xf32>
      %cst_10 = arith.constant 3.906250e-03 : f32
      %13 = vector.broadcast %cst_10 : f32 to vector<256x1xf32>
      %14 = arith.mulf %12, %13 : vector<256x1xf32>
      %c0_11 = arith.constant 0 : index
      %c0_12 = arith.constant 0 : index
      %15 = vector.load %arg3[%c0_11, %c0_12] : memref<256x1xf32, #tpu.memory_space<vmem>>, vector<256x1xf32>
      tpu.vector_store %arg3[%c0_11, %c0_12], %14 {strides = array<i32>} : memref<256x1xf32, #tpu.memory_space<vmem>>, vector<256x1xf32>,
    } else {
    }
    return
  }
  func.func @transform_0(%arg0: i32, %arg1: i32) -> (i32, i32) {
    %c0_i32 = arith.constant 0 : i32
    return %arg0, %arg1 : i32, i32
  }
  func.func @transform_1(%arg0: i32, %arg1: i32) -> (i32, i32) {
    %c0_i32 = arith.constant 0 : i32
    %c0_i32_0 = arith.constant 0 : i32
    return %arg0, %c0_i32 : i32, i32
  }
}

module attributes {stable_mosaic.version = 11 : i64} {
  func.func @_ca_mlp_kernel(%arg0: i32, %arg1: memref<8x128xf32, #tpu.memory_space<vmem>>, %arg2: memref<128x128xbf16, #tpu.memory_space<vmem>>, %arg3: memref<1x128xf32, #tpu.memory_space<vmem>>, %arg4: memref<128x128xbf16, #tpu.memory_space<vmem>>, %arg5: memref<1x128xf32, #tpu.memory_space<vmem>>, %arg6: memref<8x128xf32, #tpu.memory_space<vmem>>) attributes {dimension_semantics = [#tpu.dimension_semantics<arbitrary>], iteration_bounds = array<i64: 1>, scalar_prefetch = 0 : i64, scratch_operands = 0 : i64, tpu.core_type = #tpu.core_type<tc>, window_params = [{pipeline_mode = #tpu.pipeline_mode<synchronous>, transform_indices = @transform_0, window_bounds = array<i64: 8, 128>}, {pipeline_mode = #tpu.pipeline_mode<synchronous>, transform_indices = @transform_1, window_bounds = array<i64: 128, 128>}, {pipeline_mode = #tpu.pipeline_mode<synchronous>, transform_indices = @transform_2, window_bounds = array<i64: 1, 128>}, {pipeline_mode = #tpu.pipeline_mode<synchronous>, transform_indices = @transform_3, window_bounds = array<i64: 128, 128>}, {pipeline_mode = #tpu.pipeline_mode<synchronous>, transform_indices = @transform_4, window_bounds = array<i64: 1, 128>}, {pipeline_mode = #tpu.pipeline_mode<synchronous>, transform_indices = @transform_5, window_bounds = array<i64: 8, 128>}]} {
    %c0 = arith.constant 0 : index
    %c0_0 = arith.constant 0 : index
    %0 = vector.load %arg1[%c0, %c0_0] : memref<8x128xf32, #tpu.memory_space<vmem>>, vector<8x128xf32>
    %1 = arith.truncf %0 : vector<8x128xf32> to vector<8x128xbf16>
    %c0_1 = arith.constant 0 : index
    %c0_2 = arith.constant 0 : index
    %2 = vector.load %arg2[%c0_1, %c0_2] : memref<128x128xbf16, #tpu.memory_space<vmem>>, vector<128x128xbf16>
    %cst = arith.constant dense<0.000000e+00> : vector<8x128xf32>
    %3 = tpu.matmul %1, %2, %cst {dimension_numbers = #tpu.dot_dimension_numbers<[1], [0], [0], [1], [0, 0, 1, 1], [], []>} : vector<8x128xbf16>, vector<128x128xbf16>, vector<8x128xf32> -> vector<8x128xf32>
    %c0_3 = arith.constant 0 : index
    %c0_4 = arith.constant 0 : index
    %4 = vector.load %arg3[%c0_3, %c0_4] : memref<1x128xf32, #tpu.memory_space<vmem>>, vector<1x128xf32>
    %5 = vector.broadcast %4 : vector<1x128xf32> to vector<8x128xf32>
    %6 = arith.addf %3, %5 : vector<8x128xf32>
    %cst_5 = arith.constant 0.000000e+00 : f32
    %7 = vector.broadcast %cst_5 : f32 to vector<8x128xf32>
    %8 = arith.maximumf %6, %7 : vector<8x128xf32>
    %9 = arith.truncf %8 : vector<8x128xf32> to vector<8x128xbf16>
    %c0_6 = arith.constant 0 : index
    %c0_7 = arith.constant 0 : index
    %10 = vector.load %arg4[%c0_6, %c0_7] : memref<128x128xbf16, #tpu.memory_space<vmem>>, vector<128x128xbf16>
    %cst_8 = arith.constant dense<0.000000e+00> : vector<8x128xf32>
    %11 = tpu.matmul %9, %10, %cst_8 {dimension_numbers = #tpu.dot_dimension_numbers<[1], [0], [0], [1], [0, 0, 1, 1], [], []>} : vector<8x128xbf16>, vector<128x128xbf16>, vector<8x128xf32> -> vector<8x128xf32>
    %c0_9 = arith.constant 0 : index
    %c0_10 = arith.constant 0 : index
    %12 = vector.load %arg5[%c0_9, %c0_10] : memref<1x128xf32, #tpu.memory_space<vmem>>, vector<1x128xf32>
    %13 = vector.broadcast %12 : vector<1x128xf32> to vector<8x128xf32>
    %14 = arith.addf %11, %13 : vector<8x128xf32>
    %cst_11 = arith.constant -2.000000e+00 : f32
    %15 = vector.broadcast %cst_11 : f32 to vector<8x128xf32>
    %16 = arith.mulf %15, %14 : vector<8x128xf32>
    %17 = math.exp %16 : vector<8x128xf32>
    %cst_12 = arith.constant 1.000000e+00 : f32
    %18 = vector.broadcast %cst_12 : f32 to vector<8x128xf32>
    %19 = arith.addf %18, %17 : vector<8x128xf32>
    %cst_13 = arith.constant 1.000000e+00 : f32
    %20 = vector.broadcast %cst_13 : f32 to vector<8x128xf32>
    %21 = arith.divf %20, %19 : vector<8x128xf32>
    %c0_14 = arith.constant 0 : index
    %c0_15 = arith.constant 0 : index
    %22 = vector.load %arg6[%c0_14, %c0_15] : memref<8x128xf32, #tpu.memory_space<vmem>>, vector<8x128xf32>
    tpu.vector_store %arg6[%c0_14, %c0_15], %21 {strides = array<i32>} : memref<8x128xf32, #tpu.memory_space<vmem>>, vector<8x128xf32>,
    return
  }
  func.func @transform_0(%arg0: i32) -> (i32, i32) {
    %c0_i32 = arith.constant 0 : i32
    %c0_i32_0 = arith.constant 0 : i32
    %c0_i32_1 = arith.constant 0 : i32
    return %c0_i32, %c0_i32_0 : i32, i32
  }
  func.func @transform_1(%arg0: i32) -> (i32, i32) {
    %c0_i32 = arith.constant 0 : i32
    %c0_i32_0 = arith.constant 0 : i32
    %c0_i32_1 = arith.constant 0 : i32
    return %c0_i32, %c0_i32_0 : i32, i32
  }
  func.func @transform_2(%arg0: i32) -> (i32, i32) {
    %c0_i32 = arith.constant 0 : i32
    %c0_i32_0 = arith.constant 0 : i32
    %c0_i32_1 = arith.constant 0 : i32
    return %c0_i32, %c0_i32_0 : i32, i32
  }
  func.func @transform_3(%arg0: i32) -> (i32, i32) {
    %c0_i32 = arith.constant 0 : i32
    %c0_i32_0 = arith.constant 0 : i32
    %c0_i32_1 = arith.constant 0 : i32
    return %c0_i32, %c0_i32_0 : i32, i32
  }
  func.func @transform_4(%arg0: i32) -> (i32, i32) {
    %c0_i32 = arith.constant 0 : i32
    %c0_i32_0 = arith.constant 0 : i32
    %c0_i32_1 = arith.constant 0 : i32
    return %c0_i32, %c0_i32_0 : i32, i32
  }
  func.func @transform_5(%arg0: i32) -> (i32, i32) {
    %c0_i32 = arith.constant 0 : i32
    %c0_i32_0 = arith.constant 0 : i32
    %c0_i32_1 = arith.constant 0 : i32
    return %c0_i32, %c0_i32_0 : i32, i32
  }
}

</mosaic_0001>

<llo_original>
// kernel: channel_attention_forward.2
$region0: #{channel_attention_forward.2}
  #allocation0 [shape = 'u32[]', space=smem, size = 0x4, offset = 0x4, fixed_abs, tag = 'smem constant byte address 0x4 - core index']
  #allocation1 [shape = 'u32[144,128]{1,0:T(1,128)}', space=vmem, size = 0x12000, scoped, tag = 'internal scratch']
  #allocation2 [shape = 'f32[256,1]{1,0:T(8,128)}', space=vmem, size = 0x20000, scoped, tag = 'scratch operand']
  %s0 = inlined_call_operand.vmem [shape: f32[256,256], index: 0, kind: input, shape index: {}]
  %s1 = inlined_call_operand.vmem [shape: f32[256,1], index: 1, kind: output, shape index: {}]
  %s2 = sld [smem:[#allocation0]]
  $region22: #{channel_attention_forward.2} parent=0
    _
  %s4 = ssub.s32 1, %s2
  %s5 = scalar_select 0, %s4, %s2
  // Predicated region
  $region2: #{channel_attention_forward.2} parent=0 // pred_check
    _
  $region3: #{channel_attention_forward.2} parent=0 // pred_check_branch
    %7 = sbr.rel (0) target = $region5
  $region4: #{channel_attention_forward.2} parent=0 // pred_region
    _
  $region5: #{channel_attention_forward.2} parent=0 // pred_fallthru
    _
  %p8 = scmp.eq.s32.totalorder 0, 0
  // Predicated region
  $region6: #{channel_attention_forward.2} parent=0 // pred_check
    %p9 = pneg %p8
  $region7: #{channel_attention_forward.2} parent=0 // pred_check_branch
    %11 = sbr.rel (%p9) target = $region9
  $region8: #{channel_attention_forward.2} parent=0 // pred_region
    %vm12 = vcmask 7168
    %13 = vst.msk [vmem:[#allocation2] sm:$0xff] %vm12, 0.0
    %14 = vst.msk [vmem:[#allocation2 + $0x8] sm:$0xff] %vm12, 0.0
    %15 = vst.msk [vmem:[#allocation2 + $0x10] sm:$0xff] %vm12, 0.0
    %16 = vst.msk [vmem:[#allocation2 + $0x18] sm:$0xff] %vm12, 0.0
    %17 = vst.msk [vmem:[#allocation2 + $0x20] sm:$0xff] %vm12, 0.0
    %18 = vst.msk [vmem:[#allocation2 + $0x28] sm:$0xff] %vm12, 0.0
    %19 = vst.msk [vmem:[#allocation2 + $0x30] sm:$0xff] %vm12, 0.0
    %20 = vst.msk [vmem:[#allocation2 + $0x38] sm:$0xff] %vm12, 0.0
    %21 = vst.msk [vmem:[#allocation2 + $0x40] sm:$0xff] %vm12, 0.0
    %22 = vst.msk [vmem:[#allocation2 + $0x48] sm:$0xff] %vm12, 0.0
    %23 = vst.msk [vmem:[#allocation2 + $0x50] sm:$0xff] %vm12, 0.0
    %24 = vst.msk [vmem:[#allocation2 + $0x58] sm:$0xff] %vm12, 0.0
    %25 = vst.msk [vmem:[#allocation2 + $0x60] sm:$0xff] %vm12, 0.0
    %26 = vst.msk [vmem:[#allocation2 + $0x68] sm:$0xff] %vm12, 0.0
    %27 = vst.msk [vmem:[#allocation2 + $0x70] sm:$0xff] %vm12, 0.0
    %28 = vst.msk [vmem:[#allocation2 + $0x78] sm:$0xff] %vm12, 0.0
    %29 = vst.msk [vmem:[#allocation2 + $0x80] sm:$0xff] %vm12, 0.0
    %30 = vst.msk [vmem:[#allocation2 + $0x88] sm:$0xff] %vm12, 0.0
    %31 = vst.msk [vmem:[#allocation2 + $0x90] sm:$0xff] %vm12, 0.0
    %32 = vst.msk [vmem:[#allocation2 + $0x98] sm:$0xff] %vm12, 0.0
    %33 = vst.msk [vmem:[#allocation2 + $0xa0] sm:$0xff] %vm12, 0.0
    %34 = vst.msk [vmem:[#allocation2 + $0xa8] sm:$0xff] %vm12, 0.0
    %35 = vst.msk [vmem:[#allocation2 + $0xb0] sm:$0xff] %vm12, 0.0
    %36 = vst.msk [vmem:[#allocation2 + $0xb8] sm:$0xff] %vm12, 0.0
    %37 = vst.msk [vmem:[#allocation2 + $0xc0] sm:$0xff] %vm12, 0.0
    %38 = vst.msk [vmem:[#allocation2 + $0xc8] sm:$0xff] %vm12, 0.0
    %39 = vst.msk [vmem:[#allocation2 + $0xd0] sm:$0xff] %vm12, 0.0
    %40 = vst.msk [vmem:[#allocation2 + $0xd8] sm:$0xff] %vm12, 0.0
    %41 = vst.msk [vmem:[#allocation2 + $0xe0] sm:$0xff] %vm12, 0.0
    %42 = vst.msk [vmem:[#allocation2 + $0xe8] sm:$0xff] %vm12, 0.0
    %43 = vst.msk [vmem:[#allocation2 + $0xf0] sm:$0xff] %vm12, 0.0
    %44 = vst.msk [vmem:[#allocation2 + $0xf8] sm:$0xff] %vm12, 0.0
  $region9: #{channel_attention_forward.2} parent=0 // pred_fallthru
    _
  %v45 = vld [vmem:[#allocation2] sm:$0xff]
  %v46 = vld [vmem:[#allocation2 + $0x8] sm:$0xff]
  %v47 = vld [vmem:[#allocation2 + $0x10] sm:$0xff]
  %v48 = vld [vmem:[#allocation2 + $0x18] sm:$0xff]
  %v49 = vld [vmem:[#allocation2 + $0x20] sm:$0xff]
  %v50 = vld [vmem:[#allocation2 + $0x28] sm:$0xff]
  %v51 = vld [vmem:[#allocation2 + $0x30] sm:$0xff]
  %v52 = vld [vmem:[#allocation2 + $0x38] sm:$0xff]
  %v53 = vld [vmem:[#allocation2 + $0x40] sm:$0xff]
  %v54 = vld [vmem:[#allocation2 + $0x48] sm:$0xff]
  %v55 = vld [vmem:[#allocation2 + $0x50] sm:$0xff]
  %v56 = vld [vmem:[#allocation2 + $0x58] sm:$0xff]
  %v57 = vld [vmem:[#allocation2 + $0x60] sm:$0xff]
  %v58 = vld [vmem:[#allocation2 + $0x68] sm:$0xff]
  %v59 = vld [vmem:[#allocation2 + $0x70] sm:$0xff]
  %v60 = vld [vmem:[#allocation2 + $0x78] sm:$0xff]
  %v61 = vld [vmem:[#allocation2 + $0x80] sm:$0xff]
  %v62 = vld [vmem:[#allocation2 + $0x88] sm:$0xff]
  %v63 = vld [vmem:[#allocation2 + $0x90] sm:$0xff]
  %v64 = vld [vmem:[#allocation2 + $0x98] sm:$0xff]
  %v65 = vld [vmem:[#allocation2 + $0xa0] sm:$0xff]
  %v66 = vld [vmem:[#allocation2 + $0xa8] sm:$0xff]
  %v67 = vld [vmem:[#allocation2 + $0xb0] sm:$0xff]
  %v68 = vld [vmem:[#allocation2 + $0xb8] sm:$0xff]
  %v69 = vld [vmem:[#allocation2 + $0xc0] sm:$0xff]
  %v70 = vld [vmem:[#allocation2 + $0xc8] sm:$0xff]
  %v71 = vld [vmem:[#allocation2 + $0xd0] sm:$0xff]
  %v72 = vld [vmem:[#allocation2 + $0xd8] sm:$0xff]
  %v73 = vld [vmem:[#allocation2 + $0xe0] sm:$0xff]
  %v74 = vld [vmem:[#allocation2 + $0xe8] sm:$0xff]
  %v75 = vld [vmem:[#allocation2 + $0xf0] sm:$0xff]
  %v76 = vld [vmem:[#allocation2 + $0xf8] sm:$0xff]
  %v77 = vld [vmem:[%s0] sm:$0xff]
  %v78 = vld [vmem:[%s0 + $0x8] sm:$0xff]
  %v79 = vld [vmem:[%s0 + $0x10] sm:$0xff]
  %v80 = vld [vmem:[%s0 + $0x18] sm:$0xff]
  %v81 = vld [vmem:[%s0 + $0x20] sm:$0xff]
  %v82 = vld [vmem:[%s0 + $0x28] sm:$0xff]
  %v83 = vld [vmem:[%s0 + $0x30] sm:$0xff]
  %v84 = vld [vmem:[%s0 + $0x38] sm:$0xff]
  %v85 = vld [vmem:[%s0 + $0x40] sm:$0xff]
  %v86 = vld [vmem:[%s0 + $0x48] sm:$0xff]
  %v87 = vld [vmem:[%s0 + $0x50] sm:$0xff]
  %v88 = vld [vmem:[%s0 + $0x58] sm:$0xff]
  %v89 = vld [vmem:[%s0 + $0x60] sm:$0xff]
  %v90 = vld [vmem:[%s0 + $0x68] sm:$0xff]
  %v91 = vld [vmem:[%s0 + $0x70] sm:$0xff]
  %v92 = vld [vmem:[%s0 + $0x78] sm:$0xff]
  %v93 = vld [vmem:[%s0 + $0x80] sm:$0xff]
  %v94 = vld [vmem:[%s0 + $0x88] sm:$0xff]
  %v95 = vld [vmem:[%s0 + $0x90] sm:$0xff]
  %v96 = vld [vmem:[%s0 + $0x98] sm:$0xff]
  %v97 = vld [vmem:[%s0 + $0xa0] sm:$0xff]
  %v98 = vld [vmem:[%s0 + $0xa8] sm:$0xff]
  %v99 = vld [vmem:[%s0 + $0xb0] sm:$0xff]
  %v100 = vld [vmem:[%s0 + $0xb8] sm:$0xff]
  %v101 = vld [vmem:[%s0 + $0xc0] sm:$0xff]
  %v102 = vld [vmem:[%s0 + $0xc8] sm:$0xff]
  %v103 = vld [vmem:[%s0 + $0xd0] sm:$0xff]
  %v104 = vld [vmem:[%s0 + $0xd8] sm:$0xff]
  %v105 = vld [vmem:[%s0 + $0xe0] sm:$0xff]
  %v106 = vld [vmem:[%s0 + $0xe8] sm:$0xff]
  %v107 = vld [vmem:[%s0 + $0xf0] sm:$0xff]
  %v108 = vld [vmem:[%s0 + $0xf8] sm:$0xff]
  %v109 = vld [vmem:[%s0 + $0x100] sm:$0xff]
  %v110 = vld [vmem:[%s0 + $0x108] sm:$0xff]
  %v111 = vld [vmem:[%s0 + $0x110] sm:$0xff]
  %v112 = vld [vmem:[%s0 + $0x118] sm:$0xff]
  %v113 = vld [vmem:[%s0 + $0x120] sm:$0xff]
  %v114 = vld [vmem:[%s0 + $0x128] sm:$0xff]
  %v115 = vld [vmem:[%s0 + $0x130] sm:$0xff]
  %v116 = vld [vmem:[%s0 + $0x138] sm:$0xff]
  %v117 = vld [vmem:[%s0 + $0x140] sm:$0xff]
  %v118 = vld [vmem:[%s0 + $0x148] sm:$0xff]
  %v119 = vld [vmem:[%s0 + $0x150] sm:$0xff]
  %v120 = vld [vmem:[%s0 + $0x158] sm:$0xff]
  %v121 = vld [vmem:[%s0 + $0x160] sm:$0xff]
  %v122 = vld [vmem:[%s0 + $0x168] sm:$0xff]
  %v123 = vld [vmem:[%s0 + $0x170] sm:$0xff]
  %v124 = vld [vmem:[%s0 + $0x178] sm:$0xff]
  %v125 = vld [vmem:[%s0 + $0x180] sm:$0xff]
  %v126 = vld [vmem:[%s0 + $0x188] sm:$0xff]
  %v127 = vld [vmem:[%s0 + $0x190] sm:$0xff]
  %v128 = vld [vmem:[%s0 + $0x198] sm:$0xff]
  %v129 = vld [vmem:[%s0 + $0x1a0] sm:$0xff]
  %v130 = vld [vmem:[%s0 + $0x1a8] sm:$0xff]
  %v131 = vld [vmem:[%s0 + $0x1b0] sm:$0xff]
  %v132 = vld [vmem:[%s0 + $0x1b8] sm:$0xff]
  %v133 = vld [vmem:[%s0 + $0x1c0] sm:$0xff]
  %v134 = vld [vmem:[%s0 + $0x1c8] sm:$0xff]
  %v135 = vld [vmem:[%s0 + $0x1d0] sm:$0xff]
  %v136 = vld [vmem:[%s0 + $0x1d8] sm:$0xff]
  %v137 = vld [vmem:[%s0 + $0x1e0] sm:$0xff]
  %v138 = vld [vmem:[%s0 + $0x1e8] sm:$0xff]
  %v139 = vld [vmem:[%s0 + $0x1f0] sm:$0xff]
  %v140 = vld [vmem:[%s0 + $0x1f8] sm:$0xff]
  %v141 = vadd.f32 %v77, %v78
  %142 = vadd.xlane.f32.xlu0 %v141
  %v143 = vpop.xlane.xlu0 %142
  %v144 = vadd.f32 %v79, %v80
  %145 = vadd.xlane.f32.xlu0 %v144
  %v146 = vpop.xlane.xlu0 %145
  %v147 = vadd.f32 %v81, %v82
  %148 = vadd.xlane.f32.xlu0 %v147
  %v149 = vpop.xlane.xlu0 %148
  %v150 = vadd.f32 %v83, %v84
  %151 = vadd.xlane.f32.xlu0 %v150
  %v152 = vpop.xlane.xlu0 %151
  %v153 = vadd.f32 %v85, %v86
  %154 = vadd.xlane.f32.xlu0 %v153
  %v155 = vpop.xlane.xlu0 %154
  %v156 = vadd.f32 %v87, %v88
  %157 = vadd.xlane.f32.xlu0 %v156
  %v158 = vpop.xlane.xlu0 %157
  %v159 = vadd.f32 %v89, %v90
  %160 = vadd.xlane.f32.xlu0 %v159
  %v161 = vpop.xlane.xlu0 %160
  %v162 = vadd.f32 %v91, %v92
  %163 = vadd.xlane.f32.xlu0 %v162
  %v164 = vpop.xlane.xlu0 %163
  %v165 = vadd.f32 %v93, %v94
  %166 = vadd.xlane.f32.xlu0 %v165
  %v167 = vpop.xlane.xlu0 %166
  %v168 = vadd.f32 %v95, %v96
  %169 = vadd.xlane.f32.xlu0 %v168
  %v170 = vpop.xlane.xlu0 %169
  %v171 = vadd.f32 %v97, %v98
  %172 = vadd.xlane.f32.xlu0 %v171
  %v173 = vpop.xlane.xlu0 %172
  %v174 = vadd.f32 %v99, %v100
  %175 = vadd.xlane.f32.xlu0 %v174
  %v176 = vpop.xlane.xlu0 %175
  %v177 = vadd.f32 %v101, %v102
  %178 = vadd.xlane.f32.xlu0 %v177
  %v179 = vpop.xlane.xlu0 %178
  %v180 = vadd.f32 %v103, %v104
  %181 = vadd.xlane.f32.xlu0 %v180
  %v182 = vpop.xlane.xlu0 %181
  %v183 = vadd.f32 %v105, %v106
  %184 = vadd.xlane.f32.xlu0 %v183
  %v185 = vpop.xlane.xlu0 %184
  %v186 = vadd.f32 %v107, %v108
  %187 = vadd.xlane.f32.xlu0 %v186
  %v188 = vpop.xlane.xlu0 %187
  %v189 = vadd.f32 %v109, %v110
  %190 = vadd.xlane.f32.xlu0 %v189
  %v191 = vpop.xlane.xlu0 %190
  %v192 = vadd.f32 %v111, %v112
  %193 = vadd.xlane.f32.xlu0 %v192
  %v194 = vpop.xlane.xlu0 %193
  %v195 = vadd.f32 %v113, %v114
  %196 = vadd.xlane.f32.xlu0 %v195
  %v197 = vpop.xlane.xlu0 %196
  %v198 = vadd.f32 %v115, %v116
  %199 = vadd.xlane.f32.xlu0 %v198
  %v200 = vpop.xlane.xlu0 %199
  %v201 = vadd.f32 %v117, %v118
  %202 = vadd.xlane.f32.xlu0 %v201
  %v203 = vpop.xlane.xlu0 %202
  %v204 = vadd.f32 %v119, %v120
  %205 = vadd.xlane.f32.xlu0 %v204
  %v206 = vpop.xlane.xlu0 %205
  %v207 = vadd.f32 %v121, %v122
  %208 = vadd.xlane.f32.xlu0 %v207
  %v209 = vpop.xlane.xlu0 %208
  %v210 = vadd.f32 %v123, %v124
  %211 = vadd.xlane.f32.xlu0 %v210
  %v212 = vpop.xlane.xlu0 %211
  %v213 = vadd.f32 %v125, %v126
  %214 = vadd.xlane.f32.xlu0 %v213
  %v215 = vpop.xlane.xlu0 %214
  %v216 = vadd.f32 %v127, %v128
  %217 = vadd.xlane.f32.xlu0 %v216
  %v218 = vpop.xlane.xlu0 %217
  %v219 = vadd.f32 %v129, %v130
  %220 = vadd.xlane.f32.xlu0 %v219
  %v221 = vpop.xlane.xlu0 %220
  %v222 = vadd.f32 %v131, %v132
  %223 = vadd.xlane.f32.xlu0 %v222
  %v224 = vpop.xlane.xlu0 %223
  %v225 = vadd.f32 %v133, %v134
  %226 = vadd.xlane.f32.xlu0 %v225
  %v227 = vpop.xlane.xlu0 %226
  %v228 = vadd.f32 %v135, %v136
  %229 = vadd.xlane.f32.xlu0 %v228
  %v230 = vpop.xlane.xlu0 %229
  %v231 = vadd.f32 %v137, %v138
  %232 = vadd.xlane.f32.xlu0 %v231
  %v233 = vpop.xlane.xlu0 %232
  %v234 = vadd.f32 %v139, %v140
  %235 = vadd.xlane.f32.xlu0 %v234
  %v236 = vpop.xlane.xlu0 %235
  %v237 = vadd.f32 %v45, %v143
  %v238 = vadd.f32 %v46, %v146
  %v239 = vadd.f32 %v47, %v149
  %v240 = vadd.f32 %v48, %v152
  %v241 = vadd.f32 %v49, %v155
  %v242 = vadd.f32 %v50, %v158
  %v243 = vadd.f32 %v51, %v161
  %v244 = vadd.f32 %v52, %v164
  %v245 = vadd.f32 %v53, %v167
  %v246 = vadd.f32 %v54, %v170
  %v247 = vadd.f32 %v55, %v173
  %v248 = vadd.f32 %v56, %v176
  %v249 = vadd.f32 %v57, %v179
  %v250 = vadd.f32 %v58, %v182
  %v251 = vadd.f32 %v59, %v185
  %v252 = vadd.f32 %v60, %v188
  %v253 = vadd.f32 %v61, %v191
  %v254 = vadd.f32 %v62, %v194
  %v255 = vadd.f32 %v63, %v197
  %v256 = vadd.f32 %v64, %v200
  %v257 = vadd.f32 %v65, %v203
  %v258 = vadd.f32 %v66, %v206
  %v259 = vadd.f32 %v67, %v209
  %v260 = vadd.f32 %v68, %v212
  %v261 = vadd.f32 %v69, %v215
  %v262 = vadd.f32 %v70, %v218
  %v263 = vadd.f32 %v71, %v221
  %v264 = vadd.f32 %v72, %v224
  %v265 = vadd.f32 %v73, %v227
  %v266 = vadd.f32 %v74, %v230
  %v267 = vadd.f32 %v75, %v233
  %v268 = vadd.f32 %v76, %v236
  %vm269 = vcmask 7168
  %270 = vst.msk [vmem:[#allocation2] sm:$0xff] %vm269, %v237
  %271 = vst.msk [vmem:[#allocation2 + $0x8] sm:$0xff] %vm269, %v238
  %272 = vst.msk [vmem:[#allocation2 + $0x10] sm:$0xff] %vm269, %v239
  %273 = vst.msk [vmem:[#allocation2 + $0x18] sm:$0xff] %vm269, %v240
  %274 = vst.msk [vmem:[#allocation2 + $0x20] sm:$0xff] %vm269, %v241
  %275 = vst.msk [vmem:[#allocation2 + $0x28] sm:$0xff] %vm269, %v242
  %276 = vst.msk [vmem:[#allocation2 + $0x30] sm:$0xff] %vm269, %v243
  %277 = vst.msk [vmem:[#allocation2 + $0x38] sm:$0xff] %vm269, %v244
  %278 = vst.msk [vmem:[#allocation2 + $0x40] sm:$0xff] %vm269, %v245
  %279 = vst.msk [vmem:[#allocation2 + $0x48] sm:$0xff] %vm269, %v246
  %280 = vst.msk [vmem:[#allocation2 + $0x50] sm:$0xff] %vm269, %v247
  %281 = vst.msk [vmem:[#allocation2 + $0x58] sm:$0xff] %vm269, %v248
  %282 = vst.msk [vmem:[#allocation2 + $0x60] sm:$0xff] %vm269, %v249
  %283 = vst.msk [vmem:[#allocation2 + $0x68] sm:$0xff] %vm269, %v250
  %284 = vst.msk [vmem:[#allocation2 + $0x70] sm:$0xff] %vm269, %v251
  %285 = vst.msk [vmem:[#allocation2 + $0x78] sm:$0xff] %vm269, %v252
  %286 = vst.msk [vmem:[#allocation2 + $0x80] sm:$0xff] %vm269, %v253
  %287 = vst.msk [vmem:[#allocation2 + $0x88] sm:$0xff] %vm269, %v254
  %288 = vst.msk [vmem:[#allocation2 + $0x90] sm:$0xff] %vm269, %v255
  %289 = vst.msk [vmem:[#allocation2 + $0x98] sm:$0xff] %vm269, %v256
  %290 = vst.msk [vmem:[#allocation2 + $0xa0] sm:$0xff] %vm269, %v257
  %291 = vst.msk [vmem:[#allocation2 + $0xa8] sm:$0xff] %vm269, %v258
  %292 = vst.msk [vmem:[#allocation2 + $0xb0] sm:$0xff] %vm269, %v259
  %293 = vst.msk [vmem:[#allocation2 + $0xb8] sm:$0xff] %vm269, %v260
  %294 = vst.msk [vmem:[#allocation2 + $0xc0] sm:$0xff] %vm269, %v261
  %295 = vst.msk [vmem:[#allocation2 + $0xc8] sm:$0xff] %vm269, %v262
  %296 = vst.msk [vmem:[#allocation2 + $0xd0] sm:$0xff] %vm269, %v263
  %297 = vst.msk [vmem:[#allocation2 + $0xd8] sm:$0xff] %vm269, %v264
  %298 = vst.msk [vmem:[#allocation2 + $0xe0] sm:$0xff] %vm269, %v265
  %299 = vst.msk [vmem:[#allocation2 + $0xe8] sm:$0xff] %vm269, %v266
  %300 = vst.msk [vmem:[#allocation2 + $0xf0] sm:$0xff] %vm269, %v267
  %301 = vst.msk [vmem:[#allocation2 + $0xf8] sm:$0xff] %vm269, %v268
  // Predicated region
  $region10: #{channel_attention_forward.2} parent=0 // pred_check
    %p302 = pneg %p8
  $region11: #{channel_attention_forward.2} parent=0 // pred_check_branch
    %304 = sbr.rel (%p302) target = $region13
  $region12: #{channel_attention_forward.2} parent=0 // pred_region
    %v305 = vld [vmem:[#allocation2] sm:$0xff]
    %v306 = vld [vmem:[#allocation2 + $0x8] sm:$0xff]
    %v307 = vld [vmem:[#allocation2 + $0x10] sm:$0xff]
    %v308 = vld [vmem:[#allocation2 + $0x18] sm:$0xff]
    %v309 = vld [vmem:[#allocation2 + $0x20] sm:$0xff]
    %v310 = vld [vmem:[#allocation2 + $0x28] sm:$0xff]
    %v311 = vld [vmem:[#allocation2 + $0x30] sm:$0xff]
    %v312 = vld [vmem:[#allocation2 + $0x38] sm:$0xff]
    %v313 = vld [vmem:[#allocation2 + $0x40] sm:$0xff]
    %v314 = vld [vmem:[#allocation2 + $0x48] sm:$0xff]
    %v315 = vld [vmem:[#allocation2 + $0x50] sm:$0xff]
    %v316 = vld [vmem:[#allocation2 + $0x58] sm:$0xff]
    %v317 = vld [vmem:[#allocation2 + $0x60] sm:$0xff]
    %v318 = vld [vmem:[#allocation2 + $0x68] sm:$0xff]
    %v319 = vld [vmem:[#allocation2 + $0x70] sm:$0xff]
    %v320 = vld [vmem:[#allocation2 + $0x78] sm:$0xff]
    %v321 = vld [vmem:[#allocation2 + $0x80] sm:$0xff]
    %v322 = vld [vmem:[#allocation2 + $0x88] sm:$0xff]
    %v323 = vld [vmem:[#allocation2 + $0x90] sm:$0xff]
    %v324 = vld [vmem:[#allocation2 + $0x98] sm:$0xff]
    %v325 = vld [vmem:[#allocation2 + $0xa0] sm:$0xff]
    %v326 = vld [vmem:[#allocation2 + $0xa8] sm:$0xff]
    %v327 = vld [vmem:[#allocation2 + $0xb0] sm:$0xff]
    %v328 = vld [vmem:[#allocation2 + $0xb8] sm:$0xff]
    %v329 = vld [vmem:[#allocation2 + $0xc0] sm:$0xff]
    %v330 = vld [vmem:[#allocation2 + $0xc8] sm:$0xff]
    %v331 = vld [vmem:[#allocation2 + $0xd0] sm:$0xff]
    %v332 = vld [vmem:[#allocation2 + $0xd8] sm:$0xff]
    %v333 = vld [vmem:[#allocation2 + $0xe0] sm:$0xff]
    %v334 = vld [vmem:[#allocation2 + $0xe8] sm:$0xff]
    %v335 = vld [vmem:[#allocation2 + $0xf0] sm:$0xff]
    %v336 = vld [vmem:[#allocation2 + $0xf8] sm:$0xff]
    %v337 = vmul.f32 %v305, 0.00390625
    %v338 = vmul.f32 %v306, 0.00390625
    %v339 = vmul.f32 %v307, 0.00390625
    %v340 = vmul.f32 %v308, 0.00390625
    %v341 = vmul.f32 %v309, 0.00390625
    %v342 = vmul.f32 %v310, 0.00390625
    %v343 = vmul.f32 %v311, 0.00390625
    %v344 = vmul.f32 %v312, 0.00390625
    %v345 = vmul.f32 %v313, 0.00390625
    %v346 = vmul.f32 %v314, 0.00390625
    %v347 = vmul.f32 %v315, 0.00390625
    %v348 = vmul.f32 %v316, 0.00390625
    %v349 = vmul.f32 %v317, 0.00390625
    %v350 = vmul.f32 %v318, 0.00390625
    %v351 = vmul.f32 %v319, 0.00390625
    %v352 = vmul.f32 %v320, 0.00390625
    %v353 = vmul.f32 %v321, 0.00390625
    %v354 = vmul.f32 %v322, 0.00390625
    %v355 = vmul.f32 %v323, 0.00390625
    %v356 = vmul.f32 %v324, 0.00390625
    %v357 = vmul.f32 %v325, 0.00390625
    %v358 = vmul.f32 %v326, 0.00390625
    %v359 = vmul.f32 %v327, 0.00390625
    %v360 = vmul.f32 %v328, 0.00390625
    %v361 = vmul.f32 %v329, 0.00390625
    %v362 = vmul.f32 %v330, 0.00390625
    %v363 = vmul.f32 %v331, 0.00390625
    %v364 = vmul.f32 %v332, 0.00390625
    %v365 = vmul.f32 %v333, 0.00390625
    %v366 = vmul.f32 %v334, 0.00390625
    %v367 = vmul.f32 %v335, 0.00390625
    %v368 = vmul.f32 %v336, 0.00390625
    %369 = vst.msk [vmem:[%s1] sm:$0xff] %vm269, %v337
    %370 = vst.msk [vmem:[%s1 + $0x8] sm:$0xff] %vm269, %v338
    %371 = vst.msk [vmem:[%s1 + $0x10] sm:$0xff] %vm269, %v339
    %372 = vst.msk [vmem:[%s1 + $0x18] sm:$0xff] %vm269, %v340
    %373 = vst.msk [vmem:[%s1 + $0x20] sm:$0xff] %vm269, %v341
    %374 = vst.msk [vmem:[%s1 + $0x28] sm:$0xff] %vm269, %v342
    %375 = vst.msk [vmem:[%s1 + $0x30] sm:$0xff] %vm269, %v343
    %376 = vst.msk [vmem:[%s1 + $0x38] sm:$0xff] %vm269, %v344
    %377 = vst.msk [vmem:[%s1 + $0x40] sm:$0xff] %vm269, %v345
    %378 = vst.msk [vmem:[%s1 + $0x48] sm:$0xff] %vm269, %v346
    %379 = vst.msk [vmem:[%s1 + $0x50] sm:$0xff] %vm269, %v347
    %380 = vst.msk [vmem:[%s1 + $0x58] sm:$0xff] %vm269, %v348
    %381 = vst.msk [vmem:[%s1 + $0x60] sm:$0xff] %vm269, %v349
    %382 = vst.msk [vmem:[%s1 + $0x68] sm:$0xff] %vm269, %v350
    %383 = vst.msk [vmem:[%s1 + $0x70] sm:$0xff] %vm269, %v351
    %384 = vst.msk [vmem:[%s1 + $0x78] sm:$0xff] %vm269, %v352
    %385 = vst.msk [vmem:[%s1 + $0x80] sm:$0xff] %vm269, %v353
    %386 = vst.msk [vmem:[%s1 + $0x88] sm:$0xff] %vm269, %v354
    %387 = vst.msk [vmem:[%s1 + $0x90] sm:$0xff] %vm269, %v355
    %388 = vst.msk [vmem:[%s1 + $0x98] sm:$0xff] %vm269, %v356
    %389 = vst.msk [vmem:[%s1 + $0xa0] sm:$0xff] %vm269, %v357
    %390 = vst.msk [vmem:[%s1 + $0xa8] sm:$0xff] %vm269, %v358
    %391 = vst.msk [vmem:[%s1 + $0xb0] sm:$0xff] %vm269, %v359
    %392 = vst.msk [vmem:[%s1 + $0xb8] sm:$0xff] %vm269, %v360
    %393 = vst.msk [vmem:[%s1 + $0xc0] sm:$0xff] %vm269, %v361
    %394 = vst.msk [vmem:[%s1 + $0xc8] sm:$0xff] %vm269, %v362
    %395 = vst.msk [vmem:[%s1 + $0xd0] sm:$0xff] %vm269, %v363
    %396 = vst.msk [vmem:[%s1 + $0xd8] sm:$0xff] %vm269, %v364
    %397 = vst.msk [vmem:[%s1 + $0xe0] sm:$0xff] %vm269, %v365
    %398 = vst.msk [vmem:[%s1 + $0xe8] sm:$0xff] %vm269, %v366
    %399 = vst.msk [vmem:[%s1 + $0xf0] sm:$0xff] %vm269, %v367
    %400 = vst.msk [vmem:[%s1 + $0xf8] sm:$0xff] %vm269, %v368
  $region13: #{channel_attention_forward.2} parent=0 // pred_fallthru
    _
  // Predicated region
  $region14: #{channel_attention_forward.2} parent=0 // pred_check
    _
  $region15: #{channel_attention_forward.2} parent=0 // pred_check_branch
    %402 = sbr.rel (0) target = $region17
  $region16: #{channel_attention_forward.2} parent=0 // pred_region
    _
  $region17: #{channel_attention_forward.2} parent=0 // pred_fallthru
    _
  // Predicated region
  $region18: #{channel_attention_forward.2} parent=0 // pred_check
    _
  $region19: #{channel_attention_forward.2} parent=0 // pred_check_branch
    %404 = sbr.rel (0) target = $region21
  $region20: #{channel_attention_forward.2} parent=0 // pred_region
    _
  $region21: #{channel_attention_forward.2} parent=0 // pred_fallthru
    _

// kernel: channel_attention_forward.3
$region0: #{channel_attention_forward.3}
  #allocation0 [shape = 'u32[]', space=smem, size = 0x4, offset = 0x4, fixed_abs, tag = 'smem constant byte address 0x4 - core index']
  #allocation1 [shape = 'u32[144,128]{1,0:T(1,128)}', space=vmem, size = 0x12000, scoped, tag = 'internal scratch']
  %s0 = inlined_call_operand.vmem [shape: f32[8,128], index: 0, kind: input, shape index: {}]
  %s1 = inlined_call_operand.vmem [shape: bf16[128,128], index: 1, kind: input, shape index: {}]
  %s2 = inlined_call_operand.vmem [shape: f32[1,128], index: 2, kind: input, shape index: {}]
  %s3 = inlined_call_operand.vmem [shape: bf16[128,128], index: 3, kind: input, shape index: {}]
  %s4 = inlined_call_operand.vmem [shape: f32[1,128], index: 4, kind: input, shape index: {}]
  %s5 = inlined_call_operand.vmem [shape: f32[8,128], index: 5, kind: output, shape index: {}]
  %s6 = sld [smem:[#allocation0]]
  $region30: #{channel_attention_forward.3} parent=0
    _
  %s8 = ssub.s32 1, %s6
  %s9 = scalar_select 0, %s8, %s6
  // Predicated region
  $region2: #{channel_attention_forward.3} parent=0 // pred_check
    _
  $region3: #{channel_attention_forward.3} parent=0 // pred_check_branch
    %11 = sbr.rel (0) target = $region5
  $region4: #{channel_attention_forward.3} parent=0 // pred_region
    _
  $region5: #{channel_attention_forward.3} parent=0 // pred_fallthru
    _
  // Predicated region
  $region6: #{channel_attention_forward.3} parent=0 // pred_check
    _
  $region7: #{channel_attention_forward.3} parent=0 // pred_check_branch
    %13 = sbr.rel (0) target = $region9
  $region8: #{channel_attention_forward.3} parent=0 // pred_region
    _
  $region9: #{channel_attention_forward.3} parent=0 // pred_fallthru
    _
  // Predicated region
  $region10: #{channel_attention_forward.3} parent=0 // pred_check
    _
  $region11: #{channel_attention_forward.3} parent=0 // pred_check_branch
    %15 = sbr.rel (0) target = $region13
  $region12: #{channel_attention_forward.3} parent=0 // pred_region
    _
  $region13: #{channel_attention_forward.3} parent=0 // pred_fallthru
    _
  // Predicated region
  $region14: #{channel_attention_forward.3} parent=0 // pred_check
    _
  $region15: #{channel_attention_forward.3} parent=0 // pred_check_branch
    %17 = sbr.rel (0) target = $region17
  $region16: #{channel_attention_forward.3} parent=0 // pred_region
    _
  $region17: #{channel_attention_forward.3} parent=0 // pred_fallthru
    _
  // Predicated region
  $region18: #{channel_attention_forward.3} parent=0 // pred_check
    _
  $region19: #{channel_attention_forward.3} parent=0 // pred_check_branch
    %19 = sbr.rel (0) target = $region21
  $region20: #{channel_attention_forward.3} parent=0 // pred_region
    _
  $region21: #{channel_attention_forward.3} parent=0 // pred_fallthru
    _
  %v21 = vld [vmem:[%s0] sm:$0xff]
  %v22 = vpack.c.bf16 %v21, %v21
  %v23 = vld [vmem:[%s1] sm:$0xf]
  %v24 = vld [vmem:[%s1 + $0x4] sm:$0xf]
  %v25 = vld [vmem:[%s1 + $0x8] sm:$0xf]
  %v26 = vld [vmem:[%s1 + $0xc] sm:$0xf]
  %v27 = vld [vmem:[%s1 + $0x10] sm:$0xf]
  %v28 = vld [vmem:[%s1 + $0x14] sm:$0xf]
  %v29 = vld [vmem:[%s1 + $0x18] sm:$0xf]
  %v30 = vld [vmem:[%s1 + $0x1c] sm:$0xf]
  %v31 = vld [vmem:[%s1 + $0x20] sm:$0xf]
  %v32 = vld [vmem:[%s1 + $0x24] sm:$0xf]
  %v33 = vld [vmem:[%s1 + $0x28] sm:$0xf]
  %v34 = vld [vmem:[%s1 + $0x2c] sm:$0xf]
  %v35 = vld [vmem:[%s1 + $0x30] sm:$0xf]
  %v36 = vld [vmem:[%s1 + $0x34] sm:$0xf]
  %v37 = vld [vmem:[%s1 + $0x38] sm:$0xf]
  %v38 = vld [vmem:[%s1 + $0x3c] sm:$0xf]
  %v39 = vld [vmem:[%s2] sm:$0x1]
  %v41 = vlaneseq
  %v42 = vshrl.u32 %v41, 7
  %v43 = vsub.s32 0, %v42
  %v44 = vrot.slane %v39, %v43
  %v62 = vunpack.c.l.b16 %v23
  %v63 = vunpack.c.l.b16 %v24
  %v64 = vunpack.c.l.b16 %v25
  %v65 = vunpack.c.l.b16 %v26
  %v66 = vunpack.c.l.b16 %v27
  %v67 = vunpack.c.l.b16 %v28
  %v68 = vunpack.c.l.b16 %v29
  %v69 = vunpack.c.l.b16 %v30
  %v70 = vunpack.c.l.b16 %v31
  %v71 = vunpack.c.l.b16 %v32
  %v72 = vunpack.c.l.b16 %v33
  %v73 = vunpack.c.l.b16 %v34
  %v74 = vunpack.c.l.b16 %v35
  %v75 = vunpack.c.l.b16 %v36
  %v76 = vunpack.c.l.b16 %v37
  %v77 = vunpack.c.l.b16 %v38
  %v78 = vpack.c.b16 %v63, %v62
  %v79 = vpack.c.b16 %v65, %v64
  %v80 = vpack.c.b16 %v67, %v66
  %v81 = vpack.c.b16 %v69, %v68
  %v82 = vpack.c.b16 %v71, %v70
  %v83 = vpack.c.b16 %v73, %v72
  %v84 = vpack.c.b16 %v75, %v74
  %v85 = vpack.c.b16 %v77, %v76
  %94 = vmatprep.subr.bf16.mxu0 0
  %95 = vmatpush1.bf16.msra.mxu0 %v85
  %96 = vmatprep.subr.bf16.mxu0 0
  %97 = vmatpush1.bf16.msra.mxu0 %v84
  %98 = vmatprep.subr.bf16.mxu0 0
  %99 = vmatpush1.bf16.msra.mxu0 %v83
  %100 = vmatprep.subr.bf16.mxu0 0
  %101 = vmatpush1.bf16.msra.mxu0 %v82
  %102 = vmatprep.subr.bf16.mxu0 0
  %103 = vmatpush1.bf16.msra.mxu0 %v81
  %104 = vmatprep.subr.bf16.mxu0 0
  %105 = vmatpush1.bf16.msra.mxu0 %v80
  %106 = vmatprep.subr.bf16.mxu0 0
  %107 = vmatpush1.bf16.msra.mxu0 %v79
  %108 = vmatprep.subr.bf16.mxu0 0
  %109 = vmatpush1.bf16.msra.mxu0 %v78
  %110 = vmatprep.subr.bf16.mxu0 0
  %111 = vmatpush2.bf16.msra.mxu0 0
  %112 = vmatprep.subr.bf16.mxu0 0
  %113 = vmatpush2.bf16.msra.mxu0 0
  %114 = vmatprep.subr.bf16.mxu0 0
  %115 = vmatpush2.bf16.msra.mxu0 0
  %116 = vmatprep.subr.bf16.mxu0 0
  %117 = vmatpush2.bf16.msra.mxu0 0
  %118 = vmatprep.subr.bf16.mxu0 0
  %119 = vmatpush2.bf16.msra.mxu0 0
  %120 = vmatprep.subr.bf16.mxu0 0
  %121 = vmatpush2.bf16.msra.mxu0 0
  %122 = vmatprep.subr.bf16.mxu0 0
  %123 = vmatpush2.bf16.msra.mxu0 0
  %124 = vmatprep.subr.bf16.mxu0 0
  %125 = vmatpush2.bf16.msra.mxu0 0
  %126 = vmatprep.mubr.bf16.mxu0 0
  %127 = vmatmul.mubr.bf16.gmra.mxu0 %v22
  %v128 = vpop.f32.mrf.mxu0
  %v129 = vadd.f32 %v44, %v128
  %v130 = vpop.f32.mrf.mxu0
  %v131 = vpop.f32.mrf.mxu0
  %v132 = vpop.f32.mrf.mxu0
  %133 = vdwg.mxu0
  %v134 = vmax.f32 %v129, 0.0
  %v135 = vpack.c.bf16 %v134, %v134
  %v136 = vld [vmem:[%s3] sm:$0xf]
  %v137 = vld [vmem:[%s3 + $0x4] sm:$0xf]
  %v138 = vld [vmem:[%s3 + $0x8] sm:$0xf]
  %v139 = vld [vmem:[%s3 + $0xc] sm:$0xf]
  %v140 = vld [vmem:[%s3 + $0x10] sm:$0xf]
  %v141 = vld [vmem:[%s3 + $0x14] sm:$0xf]
  %v142 = vld [vmem:[%s3 + $0x18] sm:$0xf]
  %v143 = vld [vmem:[%s3 + $0x1c] sm:$0xf]
  %v144 = vld [vmem:[%s3 + $0x20] sm:$0xf]
  %v145 = vld [vmem:[%s3 + $0x24] sm:$0xf]
  %v146 = vld [vmem:[%s3 + $0x28] sm:$0xf]
  %v147 = vld [vmem:[%s3 + $0x2c] sm:$0xf]
  %v148 = vld [vmem:[%s3 + $0x30] sm:$0xf]
  %v149 = vld [vmem:[%s3 + $0x34] sm:$0xf]
  %v150 = vld [vmem:[%s3 + $0x38] sm:$0xf]
  %v151 = vld [vmem:[%s3 + $0x3c] sm:$0xf]
  %v152 = vld [vmem:[%s4] sm:$0x1]
  %v154 = vlaneseq
  %v155 = vshrl.u32 %v154, 7
  %v156 = vsub.s32 0, %v155
  %v157 = vrot.slane %v152, %v156
  %v175 = vunpack.c.l.b16 %v136
  %v176 = vunpack.c.l.b16 %v137
  %v177 = vunpack.c.l.b16 %v138
  %v178 = vunpack.c.l.b16 %v139
  %v179 = vunpack.c.l.b16 %v140
  %v180 = vunpack.c.l.b16 %v141
  %v181 = vunpack.c.l.b16 %v142
  %v182 = vunpack.c.l.b16 %v143
  %v183 = vunpack.c.l.b16 %v144
  %v184 = vunpack.c.l.b16 %v145
  %v185 = vunpack.c.l.b16 %v146
  %v186 = vunpack.c.l.b16 %v147
  %v187 = vunpack.c.l.b16 %v148
  %v188 = vunpack.c.l.b16 %v149
  %v189 = vunpack.c.l.b16 %v150
  %v190 = vunpack.c.l.b16 %v151
  %v191 = vpack.c.b16 %v176, %v175
  %v192 = vpack.c.b16 %v178, %v177
  %v193 = vpack.c.b16 %v180, %v179
  %v194 = vpack.c.b16 %v182, %v181
  %v195 = vpack.c.b16 %v184, %v183
  %v196 = vpack.c.b16 %v186, %v185
  %v197 = vpack.c.b16 %v188, %v187
  %v198 = vpack.c.b16 %v190, %v189
  %207 = vmatprep.subr.bf16.mxu0 0
  %208 = vmatpush1.bf16.msra.mxu0 %v198
  %209 = vmatprep.subr.bf16.mxu0 0
  %210 = vmatpush1.bf16.msra.mxu0 %v197
  %211 = vmatprep.subr.bf16.mxu0 0
  %212 = vmatpush1.bf16.msra.mxu0 %v196
  %213 = vmatprep.subr.bf16.mxu0 0
  %214 = vmatpush1.bf16.msra.mxu0 %v195
  %215 = vmatprep.subr.bf16.mxu0 0
  %216 = vmatpush1.bf16.msra.mxu0 %v194
  %217 = vmatprep.subr.bf16.mxu0 0
  %218 = vmatpush1.bf16.msra.mxu0 %v193
  %219 = vmatprep.subr.bf16.mxu0 0
  %220 = vmatpush1.bf16.msra.mxu0 %v192
  %221 = vmatprep.subr.bf16.mxu0 0
  %222 = vmatpush1.bf16.msra.mxu0 %v191
  %223 = vmatprep.subr.bf16.mxu0 0
  %224 = vmatpush2.bf16.msra.mxu0 0
  %225 = vmatprep.subr.bf16.mxu0 0
  %226 = vmatpush2.bf16.msra.mxu0 0
  %227 = vmatprep.subr.bf16.mxu0 0
  %228 = vmatpush2.bf16.msra.mxu0 0
  %229 = vmatprep.subr.bf16.mxu0 0
  %230 = vmatpush2.bf16.msra.mxu0 0
  %231 = vmatprep.subr.bf16.mxu0 0
  %232 = vmatpush2.bf16.msra.mxu0 0
  %233 = vmatprep.subr.bf16.mxu0 0
  %234 = vmatpush2.bf16.msra.mxu0 0
  %235 = vmatprep.subr.bf16.mxu0 0
  %236 = vmatpush2.bf16.msra.mxu0 0
  %237 = vmatprep.subr.bf16.mxu0 0
  %238 = vmatpush2.bf16.msra.mxu0 0
  %239 = vmatprep.mubr.bf16.mxu0 0
  %240 = vmatmul.mubr.bf16.gmra.mxu0 %v135
  %v241 = vpop.f32.mrf.mxu0
  %v242 = vadd.f32 %v157, %v241
  %v243 = vpop.f32.mrf.mxu0
  %v244 = vpop.f32.mrf.mxu0
  %v245 = vpop.f32.mrf.mxu0
  %246 = vdwg.mxu0
  %v247 = vmul.f32 %v242, -2.0
  %v248 = vmul.f32 %v247, 1.442695
  %v249 = vpow.pop %v248
  %v250 = vadd.f32 %v249, 1.0
  %v251 = vrcp.pop %v250
  %v252 = vmul.f32 1.0, %v251
  %253 = vst [vmem:[%s5] sm:$0xff] %v252
  // Predicated region
  $region22: #{channel_attention_forward.3} parent=0 // pred_check
    _
  $region23: #{channel_attention_forward.3} parent=0 // pred_check_branch
    %255 = sbr.rel (0) target = $region25
  $region24: #{channel_attention_forward.3} parent=0 // pred_region
    _
  $region25: #{channel_attention_forward.3} parent=0 // pred_fallthru
    _
  // Predicated region
  $region26: #{channel_attention_forward.3} parent=0 // pred_check
    _
  $region27: #{channel_attention_forward.3} parent=0 // pred_check_branch
    %257 = sbr.rel (0) target = $region29
  $region28: #{channel_attention_forward.3} parent=0 // pred_region
    _
  $region29: #{channel_attention_forward.3} parent=0 // pred_fallthru
    _

</llo_original>
